<compile_context>
chip_gen: v7x
topology: tpu7x:2x2x1
jax: 0.10.0
libtpu: 0.0.40
codegen_flags: <defaults>
</compile_context>

<pallas_src>
import functools

import jax
import jax.numpy as jnp
from jax import lax
from jax.experimental import pallas as pl
from jax.experimental.pallas import tpu as pltpu

_LANES = 128


def _multitask_loss_kernel(mp_ref, m_ref, lp_ref, l_ref,
                           bce_out_ref, mse_out_ref, *, tb, n_bce, n_mse):
    c = pl.program_id(0)      # which half of the row-blocks (TensorCore id on v7x)
    i = pl.program_id(1)      # step within this half (reduction axis)

    @pl.when(i == 0)
    def _init():
        bce_out_ref[...] = jnp.zeros_like(bce_out_ref)
        mse_out_ref[...] = jnp.zeros_like(mse_out_ref)

    # Global element index of every lane of this (tb, 128) tile.  (int32 is
    # sufficient for < 2^31 elements per loss stream.)
    blk = c * pl.num_programs(1) + i
    row = lax.broadcasted_iota(jnp.int32, (tb, _LANES), 0)
    lane = lax.broadcasted_iota(jnp.int32, (tb, _LANES), 1)
    gidx = (blk * tb + row) * _LANES + lane

    # ---- BCE (nn.BCELoss semantics: log clamped to >= -100, mean reduction).
    p = mp_ref[...].astype(jnp.float32)   # explicit f32 upcast (no-op for f32)
    y = m_ref[...].astype(jnp.float32)
    log_p = jnp.maximum(jnp.log(p), -100.0)
    log_1mp = jnp.maximum(jnp.log(1.0 - p), -100.0)
    # y*log(p) + (1-y)*log(1-p), rearranged (soft-label safe, one fewer vmul).
    bce_elem = log_1mp + y * (log_p - log_1mp)
    # Mask kills the <128-elem pad tail and any out-of-bounds block garbage
    # (NaN/Inf in the unselected branch is dropped by the select).
    bce_elem = jnp.where(gidx < n_bce, bce_elem, 0.0)

    # ---- MSE.
    d = lp_ref[...].astype(jnp.float32) - l_ref[...].astype(jnp.float32)
    sq = jnp.where(gidx < n_mse, d * d, 0.0)

    # Fold (tb,128) -> (8,128) with VPU adds (a no-op reshape on the native
    # (8,128) f32 tiling) and accumulate into the resident output block: the
    # only cross-step dependency is a single vreg add.
    bce_out_ref[...] += jnp.sum(bce_elem.reshape(tb // 8, 8, _LANES), axis=0)
    mse_out_ref[...] += jnp.sum(sq.reshape(tb // 8, 8, _LANES), axis=0)


def _prep(x):
    """Flatten; pad by <128 elements only if needed; view as (rows, 128)."""
    x = jnp.ravel(x)
    if x.dtype not in (jnp.float32, jnp.bfloat16):
        x = x.astype(jnp.float32)
    n = x.size
    rows = pl.cdiv(n, _LANES)
    pad = rows * _LANES - n
    if pad:
        x = jnp.pad(x, (0, pad))      # tiny copy; contents masked in-kernel
    return x.reshape(rows, _LANES), n


def _round_up(x, m):
    return ((x + m - 1) // m) * m


# TODO(synk): backward pass (custom_vjp for d(loss)/d(pred), d(loss)/d(alpha))
# is not implemented; this is a forward-only kernel.
def multitask_loss(mortality_pred, los_pred, mortality, los, alpha,
                   *, block_rows=2048):
    assert mortality_pred.shape == mortality.shape
    assert los_pred.shape == los.shape
    assert mortality_pred.size > 0 and los_pred.size > 0

    mp, n_bce = _prep(mortality_pred)
    m, _ = _prep(mortality)
    lp, n_mse = _prep(los_pred)
    l, _ = _prep(los)

    rows_bce, rows_mse = mp.shape[0], lp.shape[0]
    rows_max = max(rows_bce, rows_mse)

    # Block rows: multiple of 32 satisfies the min-tile rule for f32/bf16/int8.
    tb = max(32, min(_round_up(block_rows, 32), _round_up(rows_max, 32)))

    total_blocks = pl.cdiv(rows_max, tb)
    steps_per_core = pl.cdiv(total_blocks, 2)   # leading axis of 2 -> v7x megacore
    grid = (2, steps_per_core)

    def in_map(rows):
        last = pl.cdiv(rows, tb) - 1

        def index_map(c, i):
            # Clamp so the DMA never starts past the array; clamped (fully
            # out-of-range) blocks are entirely masked off inside the kernel.
            return (jnp.minimum(c * steps_per_core + i, last), 0)

        return index_map

    def data_spec(rows):
        return pl.BlockSpec((tb, _LANES), in_map(rows))

    part_spec = pl.BlockSpec((8, _LANES), lambda c, i: (c, 0))

    kernel = functools.partial(_multitask_loss_kernel,
                               tb=tb, n_bce=n_bce, n_mse=n_mse)

    in_bytes = ((mp.size + m.size) * mp.dtype.itemsize
                + (lp.size + l.size) * lp.dtype.itemsize)
    cost = pl.CostEstimate(flops=int(9 * n_bce + 3 * n_mse),
                           transcendentals=int(2 * n_bce),
                           bytes_accessed=int(in_bytes + 2 * 16 * _LANES * 4))

    # 4 input streams x 2 pipeline buffers; only raise the scoped-VMEM limit
    # above the v5e 16 MiB default when an oversized block is requested.
    vmem_need = 4 * 2 * tb * _LANES * 4 + 4 * 2 * 8 * _LANES * 4
    cp = dict(dimension_semantics=("parallel", "arbitrary"))
    if vmem_need > 14 * 1024 * 1024:
        cp["vmem_limit_bytes"] = int(vmem_need + 6 * 1024 * 1024)

    bce_part, mse_part = pl.pallas_call(
        kernel,
        out_shape=(jax.ShapeDtypeStruct((2 * 8, _LANES), jnp.float32),
                   jax.ShapeDtypeStruct((2 * 8, _LANES), jnp.float32)),
        grid=grid,
        in_specs=[data_spec(rows_bce), data_spec(rows_bce),
                  data_spec(rows_mse), data_spec(rows_mse)],
        out_specs=(part_spec, part_spec),
        compiler_params=pltpu.CompilerParams(**cp),
        cost_estimate=cost,
    )(mp, m, lp, l)

    # Tiny epilogue (2 x (16,128) partials): 1/N means + learnable-alpha mix,
    # matching  bce*alpha[0] + mse*alpha[1]  of the PyTorch module exactly.
    bce = -jnp.sum(bce_part) / n_bce
    mse = jnp.sum(mse_part) / n_mse
    return alpha[0] * bce + alpha[1] * mse


def multitask_loss_ref(mortality_pred, los_pred, mortality, los, alpha):
    p = mortality_pred.astype(jnp.float32)
    y = mortality.astype(jnp.float32)
    bce = -jnp.mean(
        y * jnp.maximum(jnp.log(p), -100.0)
        + (1.0 - y) * jnp.maximum(jnp.log(1.0 - p), -100.0)
    )
    mse = jnp.mean((los_pred.astype(jnp.float32) - los.astype(jnp.float32)) ** 2)
    return bce * alpha[0] + mse * alpha[1]


if __name__ == "__main__":
    key = jax.random.PRNGKey(0)
    k0, k1, k2, k3, k4, k5 = jax.random.split(key, 6)

    # nn.Parameter(torch.ones(task_num)) initialization.
    alpha = jnp.ones((2,), jnp.float32)

    def check(mp, mt, lp, lt, **kw):
        ref = multitask_loss_ref(mp, lp, mt, lt, alpha)
        out = jax.block_until_ready(multitask_loss(mp, lp, mt, lt, alpha, **kw))
        assert jnp.allclose(out, ref, rtol=1e-5, atol=1e-5), (out, ref, kw)

    # Case 1: batch not a multiple of 128 -> ragged tail masked in-kernel;
    # default (production) block size; grid (2, 1).
    b1 = 2500
    mp1 = jax.nn.sigmoid(jax.random.normal(k0, (b1,), jnp.float32))
    mt1 = jax.random.bernoulli(k1, 0.3, (b1,)).astype(jnp.float32)
    lp1 = jax.random.normal(k2, (b1,), jnp.float32) * 2.0 + 5.0
    lt1 = jax.random.normal(k3, (b1,), jnp.float32) * 2.0 + 5.0
    check(mp1, mt1, lp1, lt1)

    # Case 2: BCE and MSE streams with DIFFERENT element counts + tiny block
    # (rounded up to the 32-row min tile); exercises per-stream masking/clamp.
    b2 = 3100
    lp2 = jax.random.normal(k4, (b2,), jnp.float32) * 2.0 + 5.0
    lt2 = jax.random.normal(k5, (b2,), jnp.float32) * 2.0 + 5.0
    check(mp1, mt1, lp2, lt2, block_rows=8)

    # Case 3: multi-step grid per core with an odd block count: exercises the
    # output-block init/accumulate across the "arbitrary" axis, the 2-way
    # "parallel" split, and the fully-out-of-range clamped+masked last block.
    b3 = 9000
    mp3 = jax.nn.sigmoid(jax.random.normal(k0, (b3,), jnp.float32))
    mt3 = jax.random.bernoulli(k1, 0.3, (b3,)).astype(jnp.float32)
    lp3 = jax.random.normal(k2, (b3,), jnp.float32) * 2.0 + 5.0
    lt3 = jax.random.normal(k3, (b3,), jnp.float32) * 2.0 + 5.0
    check(mp3, mt3, lp3, lt3, block_rows=32)

    print("KERNEL_OK")
</pallas_src>

<mosaic_0001>
module attributes {stable_mosaic.version = 11 : i64} {
  func.func @_multitask_loss_kernel(%arg0: i32, %arg1: i32, %arg2: memref<32x128xf32, #tpu.memory_space<vmem>>, %arg3: memref<32x128xf32, #tpu.memory_space<vmem>>, %arg4: memref<32x128xf32, #tpu.memory_space<vmem>>, %arg5: memref<32x128xf32, #tpu.memory_space<vmem>>, %arg6: memref<8x128xf32, #tpu.memory_space<vmem>>, %arg7: memref<8x128xf32, #tpu.memory_space<vmem>>) attributes {dimension_semantics = [#tpu.dimension_semantics<parallel>, #tpu.dimension_semantics<arbitrary>], iteration_bounds = array<i64: 2, 1>, scalar_prefetch = 0 : i64, scratch_operands = 0 : i64, tpu.core_type = #tpu.core_type<tc>, window_params = [{transform_indices = @transform_0, window_bounds = array<i64: 32, 128>}, {transform_indices = @transform_1, window_bounds = array<i64: 32, 128>}, {transform_indices = @transform_2, window_bounds = array<i64: 32, 128>}, {transform_indices = @transform_3, window_bounds = array<i64: 32, 128>}, {transform_indices = @transform_4, window_bounds = array<i64: 8, 128>}, {transform_indices = @transform_5, window_bounds = array<i64: 8, 128>}]} {
    %c0_i32 = arith.constant 0 : i32
    %0 = arith.cmpi eq, %arg1, %c0_i32 : i32
    %1 = arith.extui %0 : i1 to i32
    %c0_i32_0 = arith.constant 0 : i32
    %2 = arith.cmpi ne, %1, %c0_i32_0 : i32
    scf.if %2 {
      %cst_23 = arith.constant 0.000000e+00 : f32
      %48 = vector.broadcast %cst_23 : f32 to vector<8x128xf32>
      %c0_24 = arith.constant 0 : index
      %c0_25 = arith.constant 0 : index
      %49 = vector.load %arg6[%c0_24, %c0_25] : memref<8x128xf32, #tpu.memory_space<vmem>>, vector<8x128xf32>
      tpu.vector_store %arg6[%c0_24, %c0_25], %48 {strides = array<i32>} : memref<8x128xf32, #tpu.memory_space<vmem>>, vector<8x128xf32>,
      %cst_26 = arith.constant 0.000000e+00 : f32
      %50 = vector.broadcast %cst_26 : f32 to vector<8x128xf32>
      %c0_27 = arith.constant 0 : index
      %c0_28 = arith.constant 0 : index
      %51 = vector.load %arg7[%c0_27, %c0_28] : memref<8x128xf32, #tpu.memory_space<vmem>>, vector<8x128xf32>
      tpu.vector_store %arg7[%c0_27, %c0_28], %50 {strides = array<i32>} : memref<8x128xf32, #tpu.memory_space<vmem>>, vector<8x128xf32>,
    } else {
    }
    %c1_i32 = arith.constant 1 : i32
    %3 = arith.muli %arg0, %c1_i32 : i32
    %4 = arith.addi %3, %arg1 : i32
    %5 = tpu.iota {dimensions = array<i32: 0>} : vector<32x128xi32>
    %6 = tpu.iota {dimensions = array<i32: 1>} : vector<32x128xi32>
    %c32_i32 = arith.constant 32 : i32
    %7 = arith.muli %4, %c32_i32 : i32
    %8 = vector.broadcast %7 : i32 to vector<32x128xi32>
    %9 = arith.addi %8, %5 : vector<32x128xi32>
    %c128_i32 = arith.constant 128 : i32
    %10 = vector.broadcast %c128_i32 : i32 to vector<32x128xi32>
    %11 = arith.muli %9, %10 : vector<32x128xi32>
    %12 = arith.addi %11, %6 : vector<32x128xi32>
    %c0 = arith.constant 0 : index
    %c0_1 = arith.constant 0 : index
    %13 = vector.load %arg2[%c0, %c0_1] : memref<32x128xf32, #tpu.memory_space<vmem>>, vector<32x128xf32>
    %c0_2 = arith.constant 0 : index
    %c0_3 = arith.constant 0 : index
    %14 = vector.load %arg3[%c0_2, %c0_3] : memref<32x128xf32, #tpu.memory_space<vmem>>, vector<32x128xf32>
    %15 = math.log %13 : vector<32x128xf32>
    %cst = arith.constant -1.000000e+02 : f32
    %16 = vector.broadcast %cst : f32 to vector<32x128xf32>
    %17 = arith.maximumf %15, %16 : vector<32x128xf32>
    %cst_4 = arith.constant 1.000000e+00 : f32
    %18 = vector.broadcast %cst_4 : f32 to vector<32x128xf32>
    %19 = arith.subf %18, %13 : vector<32x128xf32>
    %20 = math.log %19 : vector<32x128xf32>
    %cst_5 = arith.constant -1.000000e+02 : f32
    %21 = vector.broadcast %cst_5 : f32 to vector<32x128xf32>
    %22 = arith.maximumf %20, %21 : vector<32x128xf32>
    %23 = arith.subf %17, %22 : vector<32x128xf32>
    %24 = arith.mulf %14, %23 : vector<32x128xf32>
    %25 = arith.addf %22, %24 : vector<32x128xf32>
    %c2500_i32 = arith.constant 2500 : i32
    %26 = vector.broadcast %c2500_i32 : i32 to vector<32x128xi32>
    %27 = arith.cmpi slt, %12, %26 : vector<32x128xi32>
    %cst_6 = arith.constant 0.000000e+00 : f32
    %28 = vector.broadcast %cst_6 : f32 to vector<32x128xf32>
    %29 = arith.select %27, %25, %28 : vector<32x128xi1>, vector<32x128xf32>
    %c0_7 = arith.constant 0 : index
    %c0_8 = arith.constant 0 : index
    %30 = vector.load %arg4[%c0_7, %c0_8] : memref<32x128xf32, #tpu.memory_space<vmem>>, vector<32x128xf32>
    %c0_9 = arith.constant 0 : index
    %c0_10 = arith.constant 0 : index
    %31 = vector.load %arg5[%c0_9, %c0_10] : memref<32x128xf32, #tpu.memory_space<vmem>>, vector<32x128xf32>
    %32 = arith.subf %30, %31 : vector<32x128xf32>
    %c2500_i32_11 = arith.constant 2500 : i32
    %33 = vector.broadcast %c2500_i32_11 : i32 to vector<32x128xi32>
    %34 = arith.cmpi slt, %12, %33 : vector<32x128xi32>
    %35 = arith.mulf %32, %32 : vector<32x128xf32>
    %cst_12 = arith.constant 0.000000e+00 : f32
    %36 = vector.broadcast %cst_12 : f32 to vector<32x128xf32>
    %37 = arith.select %34, %35, %36 : vector<32x128xi1>, vector<32x128xf32>
    %c0_13 = arith.constant 0 : index
    %c0_14 = arith.constant 0 : index
    %38 = vector.load %arg6[%c0_13, %c0_14] : memref<8x128xf32, #tpu.memory_space<vmem>>, vector<8x128xf32>
    %39 = vector.shape_cast %29 : vector<32x128xf32> to vector<4x8x128xf32>
    %cst_15 = arith.constant dense<0.000000e+00> : vector<8x128xf32>
    %40 = vector.multi_reduction <add>, %39, %cst_15 [0] : vector<4x8x128xf32> to vector<8x128xf32>
    %41 = arith.addf %38, %40 : vector<8x128xf32>
    %c0_16 = arith.constant 0 : index
    %c0_17 = arith.constant 0 : index
    %42 = vector.load %arg6[%c0_16, %c0_17] : memref<8x128xf32, #tpu.memory_space<vmem>>, vector<8x128xf32>
    tpu.vector_store %arg6[%c0_16, %c0_17], %41 {strides = array<i32>} : memref<8x128xf32, #tpu.memory_space<vmem>>, vector<8x128xf32>,
    %c0_18 = arith.constant 0 : index
    %c0_19 = arith.constant 0 : index
    %43 = vector.load %arg7[%c0_18, %c0_19] : memref<8x128xf32, #tpu.memory_space<vmem>>, vector<8x128xf32>
    %44 = vector.shape_cast %37 : vector<32x128xf32> to vector<4x8x128xf32>
    %cst_20 = arith.constant dense<0.000000e+00> : vector<8x128xf32>
    %45 = vector.multi_reduction <add>, %44, %cst_20 [0] : vector<4x8x128xf32> to vector<8x128xf32>
    %46 = arith.addf %43, %45 : vector<8x128xf32>
    %c0_21 = arith.constant 0 : index
    %c0_22 = arith.constant 0 : index
    %47 = vector.load %arg7[%c0_21, %c0_22] : memref<8x128xf32, #tpu.memory_space<vmem>>, vector<8x128xf32>
    tpu.vector_store %arg7[%c0_21, %c0_22], %46 {strides = array<i32>} : memref<8x128xf32, #tpu.memory_space<vmem>>, vector<8x128xf32>,
    return
  }
  func.func @transform_0(%arg0: i32, %arg1: i32) -> (i32, i32) {
    %c1_i32 = arith.constant 1 : i32
    %0 = arith.muli %arg0, %c1_i32 : i32
    %1 = arith.addi %0, %arg1 : i32
    %c0_i32 = arith.constant 0 : i32
    %2 = arith.minsi %1, %c0_i32 : i32
    %c0_i32_0 = arith.constant 0 : i32
    %c0_i32_1 = arith.constant 0 : i32
    return %2, %c0_i32_0 : i32, i32
  }
  func.func @transform_1(%arg0: i32, %arg1: i32) -> (i32, i32) {
    %c1_i32 = arith.constant 1 : i32
    %0 = arith.muli %arg0, %c1_i32 : i32
    %1 = arith.addi %0, %arg1 : i32
    %c0_i32 = arith.constant 0 : i32
    %2 = arith.minsi %1, %c0_i32 : i32
    %c0_i32_0 = arith.constant 0 : i32
    %c0_i32_1 = arith.constant 0 : i32
    return %2, %c0_i32_0 : i32, i32
  }
  func.func @transform_2(%arg0: i32, %arg1: i32) -> (i32, i32) {
    %c1_i32 = arith.constant 1 : i32
    %0 = arith.muli %arg0, %c1_i32 : i32
    %1 = arith.addi %0, %arg1 : i32
    %c0_i32 = arith.constant 0 : i32
    %2 = arith.minsi %1, %c0_i32 : i32
    %c0_i32_0 = arith.constant 0 : i32
    %c0_i32_1 = arith.constant 0 : i32
    return %2, %c0_i32_0 : i32, i32
  }
  func.func @transform_3(%arg0: i32, %arg1: i32) -> (i32, i32) {
    %c1_i32 = arith.constant 1 : i32
    %0 = arith.muli %arg0, %c1_i32 : i32
    %1 = arith.addi %0, %arg1 : i32
    %c0_i32 = arith.constant 0 : i32
    %2 = arith.minsi %1, %c0_i32 : i32
    %c0_i32_0 = arith.constant 0 : i32
    %c0_i32_1 = arith.constant 0 : i32
    return %2, %c0_i32_0 : i32, i32
  }
  func.func @transform_4(%arg0: i32, %arg1: i32) -> (i32, i32) {
    %c0_i32 = arith.constant 0 : i32
    %c0_i32_0 = arith.constant 0 : i32
    return %arg0, %c0_i32 : i32, i32
  }
  func.func @transform_5(%arg0: i32, %arg1: i32) -> (i32, i32) {
    %c0_i32 = arith.constant 0 : i32
    %c0_i32_0 = arith.constant 0 : i32
    return %arg0, %c0_i32 : i32, i32
  }
}

</mosaic_0001>

<llo_original>
// kernel: tpu_custom_call.1
$region0: #{tpu_custom_call.1}
  #allocation0 [shape = 'u32[]', space=smem, size = 0x4, offset = 0x4, fixed_abs, tag = 'smem constant byte address 0x4 - core index']
  #allocation1 [shape = 'u32[144,128]{1,0:T(1,128)}', space=vmem, size = 0x12000, scoped, tag = 'internal scratch']
  %s0 = inlined_call_operand.hbm [shape: f32[20,128], index: 0, kind: input, shape index: {}]
  %s1 = inlined_call_operand.hbm [shape: f32[20,128], index: 1, kind: input, shape index: {}]
  %s2 = inlined_call_operand.hbm [shape: f32[20,128], index: 2, kind: input, shape index: {}]
  %s3 = inlined_call_operand.hbm [shape: f32[20,128], index: 3, kind: input, shape index: {}]
  %s4 = inlined_call_operand.hbm [shape: f32[16,128], index: 4, kind: output, shape index: {0}]
  %s5 = inlined_call_operand.hbm [shape: f32[16,128], index: 5, kind: output, shape index: {1}]
  %6 = xla_tuple %s4, %s5
  %s7 = sld [smem:[#allocation0]]
  $region77: #{tpu_custom_call.1} parent=0
    _
  %s9 = ssub.s32 1, %s7
  %s10 = scalar_select 0, %s9, %s7
  $region1: #{tpu_custom_call.1} parent=0
    #allocation2 [shape = 'u8[32768]{0}', space=vmem, size = 0x8000, scoped, tag = 'input window, operand 0']
    #allocation3 [shape = 's32[2]{0}', space=sflag, size = 0x8, scoped, tag = 'scoped memory for tpu_custom_call.1']
    #allocation4 [shape = 's32[2]{0}', space=sflag, size = 0x8, scoped, tag = 'scoped memory for tpu_custom_call.1']
    #allocation5 [shape = 'u8[32768]{0}', space=vmem, size = 0x8000, scoped, tag = 'input window, operand 1']
    #allocation6 [shape = 's32[2]{0}', space=sflag, size = 0x8, scoped, tag = 'scoped memory for tpu_custom_call.1']
    #allocation7 [shape = 'u8[32768]{0}', space=vmem, size = 0x8000, scoped, tag = 'input window, operand 2']
    #allocation8 [shape = 'u8[32768]{0}', space=vmem, size = 0x8000, scoped, tag = 'input window, operand 3']
    #allocation9 [shape = 's32[2]{0}', space=sflag, size = 0x8, scoped, tag = 'scoped memory for tpu_custom_call.1']
    #allocation10 [shape = 'u8[8192]{0}', space=vmem, size = 0x2000, scoped, tag = 'output window, operand 0']
    #allocation11 [shape = 'u8[8192]{0}', space=vmem, size = 0x2000, scoped, tag = 'output window, operand 1']
    #allocation12 [shape = 's32[2]{0}', space=sflag, size = 0x8, scoped, tag = 'scoped memory for tpu_custom_call.1']
    %11 = vsyncpa [#allocation3], 0
    %s12 = scalar_lea.sflag [#allocation3], 1
    %13 = vsyncpa %s12, 0
    %14 = vsyncpa [#allocation6], 0
    %s15 = scalar_lea.sflag [#allocation6], 1
    %16 = vsyncpa %s15, 0
    %17 = vsyncpa [#allocation9], 0
    %s18 = scalar_lea.sflag [#allocation9], 1
    %19 = vsyncpa %s18, 0
    %20 = vsyncpa [#allocation4], 0
    %s21 = scalar_lea.sflag [#allocation4], 1
    %22 = vsyncpa %s21, 0
    %23 = vsyncpa [#allocation12], 0
    %s24 = scalar_lea.sflag [#allocation12], 1
    %25 = vsyncpa %s24, 0
    loop: start=0, step=1, limit=4
    $region2: #{tpu_custom_call.1} parent=1 // loop_pre_header
      _
    $region3: #{tpu_custom_call.1} parent=1 // loop_header
      %s27 = sphi 0, %s31
      %p28 = scmp.ge.s32.totalorder %s27, 4
      %s34 = sphi 0, %s46
      %s35 = sphi 0, %s42
      %s36 = sphi 0, %s34
      %s37 = sphi 0, %s35
      %s38 = sphi 0, %s36
      %s39 = sphi 0, %s37
      %s55 = sphi 0, %s57
      %s58 = sphi 0, %s55
      %s59 = sphi 0, %s58
      %s75 = sphi 0, %s59
      %s87 = sphi 0, %s89
      %s90 = sphi 0, %s87
      %s91 = sphi 0, %s90
      %s107 = sphi 0, %s91
      %s119 = sphi 0, %s121
      %s122 = sphi 0, %s119
      %s123 = sphi 0, %s122
      %s139 = sphi 0, %s123
      %s151 = sphi 0, %s153
      %s154 = sphi 0, %s151
      %s155 = sphi 0, %s154
      %s171 = sphi 0, %s155
      %s177 = sphi 0, %s179
      %s180 = sphi 0, %s177
      %s181 = sphi 0, %s180
      %s197 = sphi 0, %s181
      %s203 = sphi 0, %s205
      %s206 = sphi 0, %s203
      %s207 = sphi 0, %s206
      %s223 = sphi 0, %s207
    $region4: #{tpu_custom_call.1} parent=1 // loop_header_branch
      %30 = sbr.rel (%p28) target = $region8
    $region5: #{tpu_custom_call.1} parent=1 // loop_body
      %s32 = ssub.s32 %s27, 1
      %s33 = ssub.s32 %s27, 2
      %s40 = sadd.s32 1, %s35
      %p41 = scmp.ge.s32.totalorder %s40, 1
      %s42 = scalar_select %p41, 0, %s40
      %s43 = sadd.s32 1, %s34
      %s44 = scalar_select %p41, %s43, %s34
      %p45 = scmp.ge.s32.totalorder %s44, 2
      %s46 = scalar_select %p45, 0, %s44
      %s47 = sadd.s32 %s34, %s35
      %p48 = scmp.lt.s32.totalorder %s47, 0
      %s49 = scalar_select %p48, %s47, 0
      %s50 = sadd.s32 %s46, %s42
      %p51 = scmp.lt.s32.totalorder %s50, 0
      %s52 = scalar_select %p51, %s50, 0
      %s53 = ssub.s32 %s49, %s52
      %p54 = scmp.eq.s32.totalorder %s53, 0
      %s56 = sadd.s32 %s55, 1
      %s57 = scalar_select %p54, %s55, %s56
      %p60 = pneg %p54
      %p61 = scmp.eq.s32.totalorder %s27, 1
      %p62 = por %p60, %p61
      %p63 = scmp.ne.s32.totalorder %s55, %s58
      %p64 = scmp.eq.s32.totalorder %s27, 0
      %p65 = por %p63, %p64
      %p66 = scmp.ne.s32.totalorder %s55, %s58
      %p67 = scmp.eq.s32.totalorder %s32, 1
      %p68 = por %p66, %p67
      %p69 = scmp.ne.s32.totalorder %s58, %s59
      %p70 = scmp.eq.s32.totalorder %s32, 0
      %p71 = por %p69, %p70
      %p72 = scmp.ne.s32.totalorder %s58, %s59
      %p73 = scmp.eq.s32.totalorder %s33, 1
      %p74 = por %p72, %p73
      %p76 = scmp.ne.s32.totalorder %s59, %s75
      %p77 = scmp.eq.s32.totalorder %s33, 0
      %p78 = por %p76, %p77
      %s79 = sadd.s32 %s34, %s35
      %p80 = scmp.lt.s32.totalorder %s79, 0
      %s81 = scalar_select %p80, %s79, 0
      %s82 = sadd.s32 %s46, %s42
      %p83 = scmp.lt.s32.totalorder %s82, 0
      %s84 = scalar_select %p83, %s82, 0
      %s85 = ssub.s32 %s81, %s84
      %p86 = scmp.eq.s32.totalorder %s85, 0
      %s88 = sadd.s32 %s87, 1
      %s89 = scalar_select %p86, %s87, %s88
      %p92 = pneg %p86
      %p93 = scmp.eq.s32.totalorder %s27, 1
      %p94 = por %p92, %p93
      %p95 = scmp.ne.s32.totalorder %s87, %s90
      %p96 = scmp.eq.s32.totalorder %s27, 0
      %p97 = por %p95, %p96
      %p98 = scmp.ne.s32.totalorder %s87, %s90
      %p99 = scmp.eq.s32.totalorder %s32, 1
      %p100 = por %p98, %p99
      %p101 = scmp.ne.s32.totalorder %s90, %s91
      %p102 = scmp.eq.s32.totalorder %s32, 0
      %p103 = por %p101, %p102
      %p104 = scmp.ne.s32.totalorder %s90, %s91
      %p105 = scmp.eq.s32.totalorder %s33, 1
      %p106 = por %p104, %p105
      %p108 = scmp.ne.s32.totalorder %s91, %s107
      %p109 = scmp.eq.s32.totalorder %s33, 0
      %p110 = por %p108, %p109
      %s111 = sadd.s32 %s34, %s35
      %p112 = scmp.lt.s32.totalorder %s111, 0
      %s113 = scalar_select %p112, %s111, 0
      %s114 = sadd.s32 %s46, %s42
      %p115 = scmp.lt.s32.totalorder %s114, 0
      %s116 = scalar_select %p115, %s114, 0
      %s117 = ssub.s32 %s113, %s116
      %p118 = scmp.eq.s32.totalorder %s117, 0
      %s120 = sadd.s32 %s119, 1
      %s121 = scalar_select %p118, %s119, %s120
      %p124 = pneg %p118
      %p125 = scmp.eq.s32.totalorder %s27, 1
      %p126 = por %p124, %p125
      %p127 = scmp.ne.s32.totalorder %s119, %s122
      %p128 = scmp.eq.s32.totalorder %s27, 0
      %p129 = por %p127, %p128
      %p130 = scmp.ne.s32.totalorder %s119, %s122
      %p131 = scmp.eq.s32.totalorder %s32, 1
      %p132 = por %p130, %p131
      %p133 = scmp.ne.s32.totalorder %s122, %s123
      %p134 = scmp.eq.s32.totalorder %s32, 0
      %p135 = por %p133, %p134
      %p136 = scmp.ne.s32.totalorder %s122, %s123
      %p137 = scmp.eq.s32.totalorder %s33, 1
      %p138 = por %p136, %p137
      %p140 = scmp.ne.s32.totalorder %s123, %s139
      %p141 = scmp.eq.s32.totalorder %s33, 0
      %p142 = por %p140, %p141
      %s143 = sadd.s32 %s34, %s35
      %p144 = scmp.lt.s32.totalorder %s143, 0
      %s145 = scalar_select %p144, %s143, 0
      %s146 = sadd.s32 %s46, %s42
      %p147 = scmp.lt.s32.totalorder %s146, 0
      %s148 = scalar_select %p147, %s146, 0
      %s149 = ssub.s32 %s145, %s148
      %p150 = scmp.eq.s32.totalorder %s149, 0
      %s152 = sadd.s32 %s151, 1
      %s153 = scalar_select %p150, %s151, %s152
      %p156 = pneg %p150
      %p157 = scmp.eq.s32.totalorder %s27, 1
      %p158 = por %p156, %p157
      %p159 = scmp.ne.s32.totalorder %s151, %s154
      %p160 = scmp.eq.s32.totalorder %s27, 0
      %p161 = por %p159, %p160
      %p162 = scmp.ne.s32.totalorder %s151, %s154
      %p163 = scmp.eq.s32.totalorder %s32, 1
      %p164 = por %p162, %p163
      %p165 = scmp.ne.s32.totalorder %s154, %s155
      %p166 = scmp.eq.s32.totalorder %s32, 0
      %p167 = por %p165, %p166
      %p168 = scmp.ne.s32.totalorder %s154, %s155
      %p169 = scmp.eq.s32.totalorder %s33, 1
      %p170 = por %p168, %p169
      %p172 = scmp.ne.s32.totalorder %s155, %s171
      %p173 = scmp.eq.s32.totalorder %s33, 0
      %p174 = por %p172, %p173
      %s175 = ssub.s32 %s34, %s46
      %p176 = scmp.eq.s32.totalorder %s175, 0
      %s178 = sadd.s32 %s177, 1
      %s179 = scalar_select %p176, %s177, %s178
      %p182 = pneg %p176
      %p183 = scmp.eq.s32.totalorder %s27, 1
      %p184 = por %p182, %p183
      %p185 = scmp.ne.s32.totalorder %s177, %s180
      %p186 = scmp.eq.s32.totalorder %s27, 0
      %p187 = por %p185, %p186
      %p188 = scmp.ne.s32.totalorder %s177, %s180
      %p189 = scmp.eq.s32.totalorder %s32, 1
      %p190 = por %p188, %p189
      %p191 = scmp.ne.s32.totalorder %s180, %s181
      %p192 = scmp.eq.s32.totalorder %s32, 0
      %p193 = por %p191, %p192
      %p194 = scmp.ne.s32.totalorder %s180, %s181
      %p195 = scmp.eq.s32.totalorder %s33, 1
      %p196 = por %p194, %p195
      %p198 = scmp.ne.s32.totalorder %s181, %s197
      %p199 = scmp.eq.s32.totalorder %s33, 0
      %p200 = por %p198, %p199
      %s201 = ssub.s32 %s34, %s46
      %p202 = scmp.eq.s32.totalorder %s201, 0
      %s204 = sadd.s32 %s203, 1
      %s205 = scalar_select %p202, %s203, %s204
      %p208 = pneg %p202
      %p209 = scmp.eq.s32.totalorder %s27, 1
      %p210 = por %p208, %p209
      %p211 = scmp.ne.s32.totalorder %s203, %s206
      %p212 = scmp.eq.s32.totalorder %s27, 0
      %p213 = por %p211, %p212
      %p214 = scmp.ne.s32.totalorder %s203, %s206
      %p215 = scmp.eq.s32.totalorder %s32, 1
      %p216 = por %p214, %p215
      %p217 = scmp.ne.s32.totalorder %s206, %s207
      %p218 = scmp.eq.s32.totalorder %s32, 0
      %p219 = por %p217, %p218
      %p220 = scmp.ne.s32.totalorder %s206, %s207
      %p221 = scmp.eq.s32.totalorder %s33, 1
      %p222 = por %p220, %p221
      %p224 = scmp.ne.s32.totalorder %s207, %s223
      %p225 = scmp.eq.s32.totalorder %s33, 0
      %p226 = por %p224, %p225
      %p227 = scmp.le.s32.totalorder 1, %s27
      %p228 = scmp.lt.s32.totalorder %s27, 3
      %p229 = pnand %p227, %p228
      %p230 = pneg %p229
      // Predicated region
      $region9: #{tpu_custom_call.1} parent=5 // pred_check
        _
      $region10: #{tpu_custom_call.1} parent=5 // pred_check_branch
        %232 = sbr.rel (%p229) target = $region12
      $region11: #{tpu_custom_call.1} parent=5 // pred_region
        %s233 = ssub.s32 %s27, 1
      $region12: #{tpu_custom_call.1} parent=5 // pred_fallthru
        _
      %p234 = scmp.lt.s32.totalorder %s27, 2
      // Predicated region
      $region13: #{tpu_custom_call.1} parent=5 // pred_check
        %p235 = pneg %p234
      $region14: #{tpu_custom_call.1} parent=5 // pred_check_branch
        %237 = sbr.rel (%p235) target = $region16
      $region15: #{tpu_custom_call.1} parent=5 // pred_region
        // Predicated region
        $region17: #{tpu_custom_call.1} parent=15 // pred_check
          %p238 = pneg %p65
        $region18: #{tpu_custom_call.1} parent=15 // pred_check_branch
          %240 = sbr.rel (%p238) target = $region20
        $region19: #{tpu_custom_call.1} parent=15 // pred_region
          %s241 = sand.u32 %s55, 1
          %s242 = scalar_lea.sflag [#allocation3], %s241
          %s243 = sand.u32 %s55, 1
          %s244 = smul.addr %s243, 32
          %s245 = scalar_lea.vmem [#allocation2], %s244
          %s246 = sadd.s32 %s34, %s35
          %p247 = scmp.lt.s32.totalorder %s246, 0
          %s248 = scalar_select %p247, %s246, 0
          %s249 = smul.u32 4, %s248
          %s250 = ssub.s32 3, %s249
          %s251 = smul.u32 128, %s250
          %s253 = ssub.s32 512, %s251
          %254 = vsyncadd %s242, %s253
          %p255 = scmp.ne.s32.totalorder 0, %s251
          %s256 = smul.addr %s249, 128
          %s257 = scalar_lea.hbm %s0, %s256
          %s258 = smul.u32 8, %s250
          %s259 = sshll.u32 %s245, 4
          %s260 = int_to_ptr.vmem [resolvable:$true] %s259
          %s261 = sshll.u32 %s258, 4
          %265 = dma.hbm_to_vmem [thread:$0]  (%p255), %s257, %s261, %s260, %s242, 128, 128, 8
        $region20: #{tpu_custom_call.1} parent=15 // pred_fallthru
          _
        // Predicated region
        $region21: #{tpu_custom_call.1} parent=15 // pred_check
          %p266 = pneg %p97
        $region22: #{tpu_custom_call.1} parent=15 // pred_check_branch
          %268 = sbr.rel (%p266) target = $region24
        $region23: #{tpu_custom_call.1} parent=15 // pred_region
          %s269 = sand.u32 %s27, 1
          %s270 = scalar_lea.sflag [#allocation6], %s269
          %s271 = sand.u32 %s87, 1
          %s272 = smul.addr %s271, 32
          %s273 = scalar_lea.vmem [#allocation5], %s272
          %s274 = sadd.s32 %s34, %s35
          %p275 = scmp.lt.s32.totalorder %s274, 0
          %s276 = scalar_select %p275, %s274, 0
          %s277 = smul.u32 4, %s276
          %s278 = ssub.s32 3, %s277
          %s279 = smul.u32 128, %s278
          %s281 = ssub.s32 512, %s279
          %282 = vsyncadd %s270, %s281
          %p283 = scmp.ne.s32.totalorder 0, %s279
          %s284 = smul.addr %s277, 128
          %s285 = scalar_lea.hbm %s1, %s284
          %s286 = smul.u32 8, %s278
          %s287 = sshll.u32 %s273, 4
          %s288 = int_to_ptr.vmem [resolvable:$true] %s287
          %s289 = sshll.u32 %s286, 4
          %293 = dma.hbm_to_vmem [thread:$0]  (%p283), %s285, %s289, %s288, %s270, 128, 128, 8
        $region24: #{tpu_custom_call.1} parent=15 // pred_fallthru
          _
        // Predicated region
        $region25: #{tpu_custom_call.1} parent=15 // pred_check
          %p294 = pneg %p129
        $region26: #{tpu_custom_call.1} parent=15 // pred_check_branch
          %296 = sbr.rel (%p294) target = $region28
        $region27: #{tpu_custom_call.1} parent=15 // pred_region
          %s297 = sand.u32 %s27, 1
          %s298 = scalar_lea.sflag [#allocation6], %s297
          %s299 = sand.u32 %s119, 1
          %s300 = smul.addr %s299, 32
          %s301 = scalar_lea.vmem [#allocation7], %s300
          %s302 = sadd.s32 %s34, %s35
          %p303 = scmp.lt.s32.totalorder %s302, 0
          %s304 = scalar_select %p303, %s302, 0
          %s305 = smul.u32 4, %s304
          %s306 = ssub.s32 3, %s305
          %s307 = smul.u32 128, %s306
          %s309 = ssub.s32 512, %s307
          %310 = vsyncadd %s298, %s309
          %p311 = scmp.ne.s32.totalorder 0, %s307
          %s312 = smul.addr %s305, 128
          %s313 = scalar_lea.hbm %s2, %s312
          %s314 = smul.u32 8, %s306
          %s315 = sshll.u32 %s301, 4
          %s316 = int_to_ptr.vmem [resolvable:$true] %s315
          %s317 = sshll.u32 %s314, 4
          %321 = dma.hbm_to_vmem [thread:$0]  (%p311), %s313, %s317, %s316, %s298, 128, 128, 8
        $region28: #{tpu_custom_call.1} parent=15 // pred_fallthru
          _
        // Predicated region
        $region29: #{tpu_custom_call.1} parent=15 // pred_check
          %p322 = pneg %p161
        $region30: #{tpu_custom_call.1} parent=15 // pred_check_branch
          %324 = sbr.rel (%p322) target = $region32
        $region31: #{tpu_custom_call.1} parent=15 // pred_region
          %s325 = sand.u32 %s151, 1
          %s326 = scalar_lea.sflag [#allocation9], %s325
          %s327 = sand.u32 %s151, 1
          %s328 = smul.addr %s327, 32
          %s329 = scalar_lea.vmem [#allocation8], %s328
          %s330 = sadd.s32 %s34, %s35
          %p331 = scmp.lt.s32.totalorder %s330, 0
          %s332 = scalar_select %p331, %s330, 0
          %s333 = smul.u32 4, %s332
          %s334 = ssub.s32 3, %s333
          %s335 = smul.u32 128, %s334
          %s337 = ssub.s32 512, %s335
          %338 = vsyncadd %s326, %s337
          %p339 = scmp.ne.s32.totalorder 0, %s335
          %s340 = smul.addr %s333, 128
          %s341 = scalar_lea.hbm %s3, %s340
          %s342 = smul.u32 8, %s334
          %s343 = sshll.u32 %s329, 4
          %s344 = int_to_ptr.vmem [resolvable:$true] %s343
          %s345 = sshll.u32 %s342, 4
          %349 = dma.hbm_to_vmem [thread:$0]  (%p339), %s341, %s345, %s344, %s326, 128, 128, 8
        $region32: #{tpu_custom_call.1} parent=15 // pred_fallthru
          _
      $region16: #{tpu_custom_call.1} parent=5 // pred_fallthru
        _
      %p350 = scmp.le.s32.totalorder 1, %s27
      %p351 = scmp.lt.s32.totalorder %s27, 3
      %p352 = pnand %p350, %p351
      %p353 = pneg %p352
      // Predicated region
      $region33: #{tpu_custom_call.1} parent=5 // pred_check
        _
      $region34: #{tpu_custom_call.1} parent=5 // pred_check_branch
        %355 = sbr.rel (%p352) target = $region36
      $region35: #{tpu_custom_call.1} parent=5 // pred_region
        %s356 = ssub.s32 %s27, 1
        %s357 = sand.u32 %s58, 1
        %s358 = scalar_lea.sflag [#allocation3], %s357
        %s359 = sand.u32 %s58, 1
        %s360 = smul.addr %s359, 32
        %s361 = scalar_lea.vmem [#allocation2], %s360
        // Predicated region
        $region37: #{tpu_custom_call.1} parent=35 // pred_check
          %p362 = pneg %p71
        $region38: #{tpu_custom_call.1} parent=35 // pred_check_branch
          %364 = sbr.rel (%p362) target = $region40
        $region39: #{tpu_custom_call.1} parent=35 // pred_region
          %365 = dma.done %s358, 512
        $region40: #{tpu_custom_call.1} parent=35 // pred_fallthru
          _
        %s366 = sand.u32 %s32, 1
        %s367 = scalar_lea.sflag [#allocation6], %s366
        %s368 = sand.u32 %s90, 1
        %s369 = smul.addr %s368, 32
        %s370 = scalar_lea.vmem [#allocation5], %s369
        // Predicated region
        $region41: #{tpu_custom_call.1} parent=35 // pred_check
          %p371 = pneg %p103
        $region42: #{tpu_custom_call.1} parent=35 // pred_check_branch
          %373 = sbr.rel (%p371) target = $region44
        $region43: #{tpu_custom_call.1} parent=35 // pred_region
          %374 = dma.done %s367, 512
        $region44: #{tpu_custom_call.1} parent=35 // pred_fallthru
          _
        %s375 = sand.u32 %s32, 1
        %s376 = scalar_lea.sflag [#allocation6], %s375
        %s377 = sand.u32 %s122, 1
        %s378 = smul.addr %s377, 32
        %s379 = scalar_lea.vmem [#allocation7], %s378
        // Predicated region
        $region45: #{tpu_custom_call.1} parent=35 // pred_check
          %p380 = pneg %p135
        $region46: #{tpu_custom_call.1} parent=35 // pred_check_branch
          %382 = sbr.rel (%p380) target = $region48
        $region47: #{tpu_custom_call.1} parent=35 // pred_region
          %383 = dma.done %s376, 512
        $region48: #{tpu_custom_call.1} parent=35 // pred_fallthru
          _
        %s384 = sand.u32 %s154, 1
        %s385 = scalar_lea.sflag [#allocation9], %s384
        %s386 = sand.u32 %s154, 1
        %s387 = smul.addr %s386, 32
        %s388 = scalar_lea.vmem [#allocation8], %s387
        // Predicated region
        $region49: #{tpu_custom_call.1} parent=35 // pred_check
          %p389 = pneg %p167
        $region50: #{tpu_custom_call.1} parent=35 // pred_check_branch
          %391 = sbr.rel (%p389) target = $region52
        $region51: #{tpu_custom_call.1} parent=35 // pred_region
          %392 = dma.done %s385, 512
        $region52: #{tpu_custom_call.1} parent=35 // pred_fallthru
          _
        %s393 = sand.u32 %s58, 1
        %s394 = scalar_lea.sflag [#allocation3], %s393
        %s395 = sand.u32 %s58, 1
        %s396 = smul.addr %s395, 32
        %s397 = scalar_lea.vmem [#allocation2], %s396
        %p398 = pneg %p71
        %p399 = pneg %p68
        %s400 = sand.u32 %s32, 1
        %s401 = scalar_lea.sflag [#allocation6], %s400
        %s402 = sand.u32 %s90, 1
        %s403 = smul.addr %s402, 32
        %s404 = scalar_lea.vmem [#allocation5], %s403
        %p405 = pneg %p103
        %p406 = pneg %p100
        %s407 = sand.u32 %s32, 1
        %s408 = scalar_lea.sflag [#allocation6], %s407
        %s409 = sand.u32 %s122, 1
        %s410 = smul.addr %s409, 32
        %s411 = scalar_lea.vmem [#allocation7], %s410
        %p412 = pneg %p135
        %p413 = pneg %p132
        %s414 = sand.u32 %s154, 1
        %s415 = scalar_lea.sflag [#allocation9], %s414
        %s416 = sand.u32 %s154, 1
        %s417 = smul.addr %s416, 32
        %s418 = scalar_lea.vmem [#allocation8], %s417
        %p419 = pneg %p167
        %p420 = pneg %p164
        %p421 = pneg %p193
        %p422 = pneg %p190
        %s423 = sand.u32 %s180, 1
        %s424 = scalar_lea.sflag [#allocation4], %s423
        %s425 = sand.u32 %s180, 1
        %s426 = smul.addr %s425, 8
        %s427 = scalar_lea.vmem [#allocation10], %s426
        %p428 = pneg %p219
        %p429 = pneg %p216
        %s430 = sand.u32 %s206, 1
        %s431 = scalar_lea.sflag [#allocation12], %s430
        %s432 = sand.u32 %s206, 1
        %s433 = smul.addr %s432, 8
        %s434 = scalar_lea.vmem [#allocation11], %s433
        %s435 = sadd.s32 %s36, %s37
        %p436 = scmp.lt.s32.totalorder %s435, 0
        %s437 = scalar_select %p436, %s435, 0
        %s438 = smul.u32 4, %s437
        %s439 = ssub.s32 3, %s438
        %s440 = smul.u32 128, %s439
        %s441 = sadd.s32 %s36, %s37
        %p442 = scmp.lt.s32.totalorder %s441, 0
        %s443 = scalar_select %p442, %s441, 0
        %s444 = smul.u32 4, %s443
        %s445 = ssub.s32 3, %s444
        %s446 = smul.u32 128, %s445
        %s447 = sadd.s32 %s36, %s37
        %p448 = scmp.lt.s32.totalorder %s447, 0
        %s449 = scalar_select %p448, %s447, 0
        %s450 = smul.u32 4, %s449
        %s451 = ssub.s32 3, %s450
        %s452 = smul.u32 128, %s451
        %s453 = sadd.s32 %s36, %s37
        %p454 = scmp.lt.s32.totalorder %s453, 0
        %s455 = scalar_select %p454, %s453, 0
        %s456 = smul.u32 4, %s455
        %s457 = ssub.s32 3, %s456
        %s458 = smul.u32 128, %s457
        %p459 = scmp.eq.s32.totalorder %s37, 0
        // Predicated region
        $region53: #{tpu_custom_call.1} parent=35 // pred_check
          %p460 = pneg %p459
        $region54: #{tpu_custom_call.1} parent=35 // pred_check_branch
          %462 = sbr.rel (%p460) target = $region56
        $region55: #{tpu_custom_call.1} parent=35 // pred_region
          %463 = vst [vmem:[%s427] sm:$0xff] 0.0
          %464 = vst [vmem:[%s434] sm:$0xff] 0.0
        $region56: #{tpu_custom_call.1} parent=35 // pred_fallthru
          _
        %s465 = sadd.s32 %s36, %s37
        %v466 = vlaneseq
        %v467 = vshrl.u32 %v466, 7
        %v468 = vadd.s32 %v467, 8
        %v469 = vadd.s32 %v467, 16
        %v470 = vadd.s32 %v467, 24
        %v471 = vlaneseq
        %v472 = vand.u32 %v471, 127
        %s473 = smul.u32 %s465, 32
        %v474 = vstv %s473
        %v475 = vadd.s32 %v474, %v467
        %v476 = vadd.s32 %v474, %v468
        %v477 = vadd.s32 %v474, %v469
        %v478 = vadd.s32 %v474, %v470
        %v479 = vmul.u32 %v475, 128
        %v480 = vmul.u32 %v476, 128
        %v481 = vmul.u32 %v477, 128
        %v482 = vmul.u32 %v478, 128
        %v483 = vadd.s32 %v479, %v472
        %v484 = vadd.s32 %v480, %v472
        %v485 = vadd.s32 %v481, %v472
        %v486 = vadd.s32 %v482, %v472
        %v487 = vld [vmem:[%s361] sm:$0xff]
        %v488 = vld [vmem:[%s361 + $0x8] sm:$0xff]
        %v489 = vld [vmem:[%s361 + $0x10] sm:$0xff]
        %v490 = vld [vmem:[%s361 + $0x18] sm:$0xff]
        %v491 = vld [vmem:[%s370] sm:$0xff]
        %v492 = vld [vmem:[%s370 + $0x8] sm:$0xff]
        %v493 = vld [vmem:[%s370 + $0x10] sm:$0xff]
        %v494 = vld [vmem:[%s370 + $0x18] sm:$0xff]
        %v495 = vlog2.pop %v487
        %v496 = vmul.f32 %v495, 0.6931472
        %v497 = vlog2.pop %v488
        %v498 = vmul.f32 %v497, 0.6931472
        %v499 = vlog2.pop %v489
        %v500 = vmul.f32 %v499, 0.6931472
        %v501 = vlog2.pop %v490
        %v502 = vmul.f32 %v501, 0.6931472
        %v503 = vmax.f32 %v496, -100.0
        %v504 = vmax.f32 %v498, -100.0
        %v505 = vmax.f32 %v500, -100.0
        %v506 = vmax.f32 %v502, -100.0
        %v507 = vsub.f32 1.0, %v487
        %v508 = vsub.f32 1.0, %v488
        %v509 = vsub.f32 1.0, %v489
        %v510 = vsub.f32 1.0, %v490
        %v511 = vlog2.pop %v507
        %v512 = vmul.f32 %v511, 0.6931472
        %v513 = vlog2.pop %v508
        %v514 = vmul.f32 %v513, 0.6931472
        %v515 = vlog2.pop %v509
        %v516 = vmul.f32 %v515, 0.6931472
        %v517 = vlog2.pop %v510
        %v518 = vmul.f32 %v517, 0.6931472
        %v519 = vmax.f32 %v512, -100.0
        %v520 = vmax.f32 %v514, -100.0
        %v521 = vmax.f32 %v516, -100.0
        %v522 = vmax.f32 %v518, -100.0
        %v523 = vsub.f32 %v503, %v519
        %v524 = vsub.f32 %v504, %v520
        %v525 = vsub.f32 %v505, %v521
        %v526 = vsub.f32 %v506, %v522
        %v527 = vmul.f32 %v491, %v523
        %v528 = vmul.f32 %v492, %v524
        %v529 = vmul.f32 %v493, %v525
        %v530 = vmul.f32 %v494, %v526
        %v531 = vadd.f32 %v519, %v527
        %v532 = vadd.f32 %v520, %v528
        %v533 = vadd.f32 %v521, %v529
        %v534 = vadd.f32 %v522, %v530
        %vm535 = vcmp.lt.s32.totalorder %v483, 2500
        %vm536 = vcmp.lt.s32.totalorder %v484, 2500
        %vm537 = vcmp.lt.s32.totalorder %v485, 2500
        %vm538 = vcmp.lt.s32.totalorder %v486, 2500
        %v539 = vsel %vm535, %v531, 0.0
        %v540 = vsel %vm536, %v532, 0.0
        %v541 = vsel %vm537, %v533, 0.0
        %v542 = vsel %vm538, %v534, 0.0
        %v543 = vld [vmem:[%s379] sm:$0xff]
        %v544 = vld [vmem:[%s379 + $0x8] sm:$0xff]
        %v545 = vld [vmem:[%s379 + $0x10] sm:$0xff]
        %v546 = vld [vmem:[%s379 + $0x18] sm:$0xff]
        %v547 = vld [vmem:[%s388] sm:$0xff]
        %v548 = vld [vmem:[%s388 + $0x8] sm:$0xff]
        %v549 = vld [vmem:[%s388 + $0x10] sm:$0xff]
        %v550 = vld [vmem:[%s388 + $0x18] sm:$0xff]
        %v551 = vsub.f32 %v543, %v547
        %v552 = vsub.f32 %v544, %v548
        %v553 = vsub.f32 %v545, %v549
        %v554 = vsub.f32 %v546, %v550
        %v555 = vmul.f32 %v551, %v551
        %v556 = vmul.f32 %v552, %v552
        %v557 = vmul.f32 %v553, %v553
        %v558 = vmul.f32 %v554, %v554
        %v559 = vsel %vm535, %v555, 0.0
        %v560 = vsel %vm536, %v556, 0.0
        %v561 = vsel %vm537, %v557, 0.0
        %v562 = vsel %vm538, %v558, 0.0
        %v563 = vld [vmem:[%s427] sm:$0xff]
        %v564 = vadd.f32 %v539, %v540
        %v565 = vadd.f32 %v564, %v541
        %v566 = vadd.f32 %v565, %v542
        %v567 = vadd.f32 %v563, %v566
        %568 = vst [vmem:[%s427] sm:$0xff] %v567
        %v569 = vld [vmem:[%s434] sm:$0xff]
        %v570 = vadd.f32 %v559, %v560
        %v571 = vadd.f32 %v570, %v561
        %v572 = vadd.f32 %v571, %v562
        %v573 = vadd.f32 %v569, %v572
        %574 = vst [vmem:[%s434] sm:$0xff] %v573
        %s575 = sand.u32 %s180, 1
        %s576 = scalar_lea.sflag [#allocation4], %s575
        %s577 = sand.u32 %s180, 1
        %s578 = smul.addr %s577, 8
        %s579 = scalar_lea.vmem [#allocation10], %s578
        %s580 = sand.u32 %s206, 1
        %s581 = scalar_lea.sflag [#allocation12], %s580
        %s582 = sand.u32 %s206, 1
        %s583 = smul.addr %s582, 8
        %s584 = scalar_lea.vmem [#allocation11], %s583
        // Predicated region
        $region57: #{tpu_custom_call.1} parent=35 // pred_check
          %p585 = pneg %p190
        $region58: #{tpu_custom_call.1} parent=35 // pred_check_branch
          %587 = sbr.rel (%p585) target = $region60
        $region59: #{tpu_custom_call.1} parent=35 // pred_region
          %s589 = ssub.s32 128, 128
          %590 = vsyncadd %s576, %s589
          %s591 = smul.addr %s36, 128
          %s592 = scalar_lea.hbm %s4, %s591
          %s594 = sshll.u32 %s579, 4
          %s595 = int_to_ptr.vmem [resolvable:$true] %s594
          %597 = dma.vmem_to_hbm [thread:$0]  %s595, 128, %s592, %s576
        $region60: #{tpu_custom_call.1} parent=35 // pred_fallthru
          _
        // Predicated region
        $region61: #{tpu_custom_call.1} parent=35 // pred_check
          %p598 = pneg %p216
        $region62: #{tpu_custom_call.1} parent=35 // pred_check_branch
          %600 = sbr.rel (%p598) target = $region64
        $region63: #{tpu_custom_call.1} parent=35 // pred_region
          %s602 = ssub.s32 128, 128
          %603 = vsyncadd %s581, %s602
          %s604 = smul.addr %s36, 128
          %s605 = scalar_lea.hbm %s5, %s604
          %s607 = sshll.u32 %s584, 4
          %s608 = int_to_ptr.vmem [resolvable:$true] %s607
          %610 = dma.vmem_to_hbm [thread:$0]  %s608, 128, %s605, %s581
        $region64: #{tpu_custom_call.1} parent=35 // pred_fallthru
          _
      $region36: #{tpu_custom_call.1} parent=5 // pred_fallthru
        _
      %p611 = scmp.le.s32.totalorder 2, %s27
      // Predicated region
      $region65: #{tpu_custom_call.1} parent=5 // pred_check
        %p612 = pneg %p611
      $region66: #{tpu_custom_call.1} parent=5 // pred_check_branch
        %614 = sbr.rel (%p612) target = $region68
      $region67: #{tpu_custom_call.1} parent=5 // pred_region
        %s615 = ssub.s32 %s27, 2
        // Predicated region
        $region69: #{tpu_custom_call.1} parent=67 // pred_check
          %p616 = pneg %p196
        $region70: #{tpu_custom_call.1} parent=67 // pred_check_branch
          %618 = sbr.rel (%p616) target = $region72
        $region71: #{tpu_custom_call.1} parent=67 // pred_region
          %s619 = sand.u32 %s181, 1
          %s620 = scalar_lea.sflag [#allocation4], %s619
          %s621 = sand.u32 %s181, 1
          %s622 = smul.addr %s621, 8
          %s623 = scalar_lea.vmem [#allocation10], %s622
          %624 = dma.done %s620, 128
        $region72: #{tpu_custom_call.1} parent=67 // pred_fallthru
          _
        // Predicated region
        $region73: #{tpu_custom_call.1} parent=67 // pred_check
          %p625 = pneg %p222
        $region74: #{tpu_custom_call.1} parent=67 // pred_check_branch
          %627 = sbr.rel (%p625) target = $region76
        $region75: #{tpu_custom_call.1} parent=67 // pred_region
          %s628 = sand.u32 %s207, 1
          %s629 = scalar_lea.sflag [#allocation12], %s628
          %s630 = sand.u32 %s207, 1
          %s631 = smul.addr %s630, 8
          %s632 = scalar_lea.vmem [#allocation11], %s631
          %633 = dma.done %s629, 128
        $region76: #{tpu_custom_call.1} parent=67 // pred_fallthru
          _
      $region68: #{tpu_custom_call.1} parent=5 // pred_fallthru
        _
    $region6: #{tpu_custom_call.1} parent=1 // loop_footer
      %s31 = sadd.s32 1, %s27
    $region7: #{tpu_custom_call.1} parent=1 // loop_footer_branch
      %26 = sbr.rel target = $region3
    $region8: #{tpu_custom_call.1} parent=1 // loop_exit
      _
    %634 = vsyncpa [#allocation3], 1
    %s635 = scalar_lea.sflag [#allocation3], 1
    %636 = vsyncpa %s635, 1
    %637 = vsyncpa [#allocation6], 1
    %s638 = scalar_lea.sflag [#allocation6], 1
    %639 = vsyncpa %s638, 1
    %640 = vsyncpa [#allocation9], 1
    %s641 = scalar_lea.sflag [#allocation9], 1
    %642 = vsyncpa %s641, 1
    %643 = vsyncpa [#allocation4], 1
    %s644 = scalar_lea.sflag [#allocation4], 1
    %645 = vsyncpa %s644, 1
    %646 = vsyncpa [#allocation12], 1
    %s647 = scalar_lea.sflag [#allocation12], 1
    %648 = vsyncpa %s647, 1

</llo_original>
